<compile_context>
chip_gen: v6e
topology: v6e:2x2x1
jax: 0.10.0
libtpu: 0.0.40
codegen_flags: <defaults>
</compile_context>

<pallas_src>
from dataclasses import dataclass

import jax
import jax.numpy as jnp
from jax.experimental import pallas as pl
from jax.experimental.pallas import tpu as pltpu


# --------------------------------------------------------------------------
# Small helpers
# --------------------------------------------------------------------------
def _round_up(x: int, m: int) -> int:
    return ((x + m - 1) // m) * m


def _cdiv(a: int, b: int) -> int:
    return -(-a // b)


def _balanced_tiles(total: int, cap: int, align: int):
    """Pick (tile, padded_total) with tile <= ~cap, tile % align == 0 and the
    number of tiles minimized -- avoids padding `total` up by nearly a full
    tile when total is just over the cap."""
    n = max(1, _cdiv(total, cap))
    tile = _round_up(_cdiv(total, n), align)
    return tile, tile * n


def _vmem_limit_bytes() -> int:
    """Generation-aware scoped-VMEM limit: ~3/4 of physical, capped at 96 MiB
    (v5e/v6e: 128 MiB physical -> 96 MiB; v7x: 64 MiB -> 48 MiB)."""
    try:
        cap = int(pltpu.get_tpu_info().vmem_capacity_bytes)
    except Exception:
        cap = 64 * 1024 * 1024  # conservative (v7x-sized) fallback
    return max(32 * 1024 * 1024, min(cap * 3 // 4, 96 * 1024 * 1024))


def _streamed_spec(shape, index_map, n_steps):
    """BlockSpec for the streamed (weight) operand.  Deeper buffering hides
    the W-tile DMA when per-step compute is shorter than the transfer
    (small-batch / weight-bound regime)."""
    if n_steps >= 3:
        try:
            return pl.BlockSpec(shape, index_map, pipeline_mode=pl.Buffered(3))
        except Exception:  # older jax without pipeline_mode / pl.Buffered
            pass
    return pl.BlockSpec(shape, index_map)


# --------------------------------------------------------------------------
# Tiling plan (computed once per module; independent of batch size)
# --------------------------------------------------------------------------
@dataclass(frozen=True)
class _Plan:
    tn: int
    tk: int
    pad_N: int
    pad_K: int
    tile_cap: int
    vmem_limit: int
    streaming: bool  # streaming (online-logsumexp) softmax path


def _make_plan(in_f: int, out_f: int, *, softmax: bool, compute_dtype,
               has_bias: bool, force_streaming: bool = False,
               out_itemsize: int = 4) -> _Plan:
    vmem_limit = _vmem_limit_bytes()
    tile_cap = 1024 if vmem_limit >= 80 * 1024 * 1024 else 512

    # K tiling: keep K whole when it fits one tile (single-K fast path, no
    # accumulator round trip, no K padding); else 256-aligned chunks <= 1024.
    if in_f <= 1024:
        tk, pad_K = in_f, in_f
    else:
        tk, pad_K = _balanced_tiles(in_f, 1024, 256)

    cbytes = jnp.dtype(compute_dtype).itemsize
    streaming = False
    if softmax:
        # Fused full-row log-softmax only if the full-row residency fits a
        # conservative VMEM budget; otherwise stream (VMEM flat in out_f).
        full_N = _round_up(out_f, 128)
        tm_est = min(tile_cap, 512)
        need = (2 * tm_est * tk * cbytes          # x (double buffered)
                + 2 * tk * full_N * cbytes        # W (double buffered)
                + (2 * full_N * 4 if has_bias else 0)
                + 2 * tm_est * full_N * out_itemsize
                + tm_est * full_N * 4)            # f32 accumulator
        if (not force_streaming) and need <= int(0.6 * vmem_limit):
            tn, pad_N = full_N, full_N
        else:
            streaming = True
            tn, pad_N = _balanced_tiles(out_f, 512, 128)
    else:
        tn, pad_N = _balanced_tiles(out_f, tile_cap, 128)

    return _Plan(tn=tn, tk=tk, pad_N=pad_N, pad_K=pad_K, tile_cap=tile_cap,
                 vmem_limit=vmem_limit, streaming=streaming)


def _prepare_params(weight_t, bias, plan: _Plan, compute_dtype):
    """Cast + pad parameters once (cached by LinearPallas)."""
    in_f, out_f = weight_t.shape
    wp = weight_t.astype(compute_dtype)
    if plan.pad_K != in_f or plan.pad_N != out_f:
        wp = jnp.pad(wp, ((0, plan.pad_K - in_f), (0, plan.pad_N - out_f)))
    bp = None
    if bias is not None:
        bp = bias.reshape(1, out_f).astype(jnp.float32)
        if plan.pad_N != out_f:
            bp = jnp.pad(bp, ((0, 0), (0, plan.pad_N - out_f)))
    return wp, bp


# --------------------------------------------------------------------------
# Kernel bodies
# --------------------------------------------------------------------------
def _activation(y, *, sigmoid: bool, softmax: bool, n_real: int):
    """Fused epilogue on an f32 tile.  The softmax variant assumes the FULL
    (padded) row is resident (grid_n == 1) and masks padded columns."""
    if sigmoid:
        return jax.nn.sigmoid(y)
    if softmax:
        col = jax.lax.broadcasted_iota(jnp.int32, y.shape, 1)
        y = jnp.where(col < n_real, y, -jnp.inf)
        m = jnp.max(y, axis=-1, keepdims=True)
        s = y - m
        return s - jnp.log(jnp.sum(jnp.exp(s), axis=-1, keepdims=True))
    return y


def _make_linear_kernel(*, sigmoid, softmax, has_bias, n_real, single_k):
    if single_k:
        # Fast path: one K tile -> no accumulator scratch, no pl.when.
        def kernel(x_ref, w_ref, *rest):
            if has_bias:
                b_ref, o_ref = rest
            else:
                (o_ref,) = rest
            y = jnp.dot(x_ref[...], w_ref[...],
                        preferred_element_type=jnp.float32)
            if has_bias:
                y = y + b_ref[...].astype(jnp.float32)
            o_ref[...] = _activation(y, sigmoid=sigmoid, softmax=softmax,
                                     n_real=n_real).astype(o_ref.dtype)
        return kernel

    def kernel(x_ref, w_ref, *rest):
        if has_bias:
            b_ref, o_ref, acc_ref = rest
        else:
            o_ref, acc_ref = rest
            b_ref = None
        k = pl.program_id(2)

        @pl.when(k == 0)
        def _init():
            if has_bias:
                acc_ref[...] = jnp.broadcast_to(
                    b_ref[...].astype(jnp.float32), acc_ref.shape)
            else:
                acc_ref[...] = jnp.zeros_like(acc_ref)

        acc_ref[...] += jnp.dot(x_ref[...], w_ref[...],
                                preferred_element_type=jnp.float32)

        @pl.when(k == pl.num_programs(2) - 1)
        def _finalize():
            o_ref[...] = _activation(acc_ref[...], sigmoid=sigmoid,
                                     softmax=softmax,
                                     n_real=n_real).astype(o_ref.dtype)
    return kernel


def _make_matmul_lse_kernel(*, has_bias, n_real, tn):
    """Streaming softmax, pass 1: tiled matmul(+bias) writing raw f32 logits
    plus an online logsumexp over the N (j) grid axis -> per-row lse."""
    def kernel(x_ref, w_ref, *rest):
        if has_bias:
            b_ref, y_ref, lse_ref, acc_ref, m_ref, l_ref = rest
        else:
            y_ref, lse_ref, acc_ref, m_ref, l_ref = rest
            b_ref = None
        j = pl.program_id(1)
        k = pl.program_id(2)
        nj = pl.num_programs(1)
        nk = pl.num_programs(2)

        @pl.when(jnp.logical_and(j == 0, k == 0))
        def _row_init():
            m_ref[...] = jnp.full(m_ref.shape, -jnp.inf, jnp.float32)
            l_ref[...] = jnp.zeros_like(l_ref)

        @pl.when(k == 0)
        def _acc_init():
            if has_bias:
                acc_ref[...] = jnp.broadcast_to(
                    b_ref[...].astype(jnp.float32), acc_ref.shape)
            else:
                acc_ref[...] = jnp.zeros_like(acc_ref)

        acc_ref[...] += jnp.dot(x_ref[...], w_ref[...],
                                preferred_element_type=jnp.float32)

        @pl.when(k == nk - 1)
        def _tile_done():
            y = acc_ref[...]
            y_ref[...] = y
            # Online logsumexp update; mask the (tail-only) padded columns.
            col = jax.lax.broadcasted_iota(jnp.int32, y.shape, 1) + j * tn
            ym = jnp.where(col < n_real, y, -jnp.inf)
            m_old = m_ref[...]
            m_new = jnp.maximum(m_old, jnp.max(ym, axis=-1, keepdims=True))
            l_ref[...] = (jnp.exp(m_old - m_new) * l_ref[...]
                          + jnp.sum(jnp.exp(ym - m_new), axis=-1,
                                    keepdims=True))
            m_ref[...] = m_new

            @pl.when(j == nj - 1)
            def _row_done():
                lse_ref[...] = m_ref[...] + jnp.log(l_ref[...])
    return kernel


def _logsoftmax_finalize_kernel(y_ref, lse_ref, o_ref):
    """Streaming softmax, pass 2: y - lse (lane-dense elementwise)."""
    o_ref[...] = (y_ref[...] - lse_ref[...]).astype(o_ref.dtype)


# --------------------------------------------------------------------------
# Forward pass
# --------------------------------------------------------------------------
def _cost(B, in_f, out_f, sigmoid, softmax, bytes_accessed):
    transc = B * out_f if sigmoid else (2 * B * out_f if softmax else 0)
    return pl.CostEstimate(flops=2 * B * in_f * out_f,
                           transcendentals=transc,
                           bytes_accessed=int(bytes_accessed))


def _linear_forward_prepared(z, wp, bp, *, plan: _Plan, in_f, out_f,
                             sigmoid, softmax, compute_dtype):
    has_bias = bp is not None
    out_dtype = z.dtype
    lead_shape = z.shape[:-1]
    if z.ndim != 2:
        z = z.reshape(-1, z.shape[-1])
    B = z.shape[0]
    assert z.shape[1] == in_f

    tn, tk, pad_N, pad_K = plan.tn, plan.tk, plan.pad_N, plan.pad_K
    tm, pad_M = _balanced_tiles(B, plan.tile_cap, 16)   # 16: bf16 sublane pack
    grid_m, grid_n, grid_k = pad_M // tm, pad_N // tn, pad_K // tk
    cbytes = jnp.dtype(compute_dtype).itemsize

    zc = z.astype(compute_dtype)
    if pad_M != B or pad_K != in_f:     # skip pad when already aligned
        zc = jnp.pad(zc, ((0, pad_M - B), (0, pad_K - in_f)))

    n_w_steps = grid_m * grid_n * grid_k
    x_spec = pl.BlockSpec((tm, tk), lambda i, j, k: (i, k))
    w_spec = _streamed_spec((tk, tn), lambda i, j, k: (k, j), n_w_steps)
    inputs = [zc, wp]
    in_specs = [x_spec, w_spec]
    if has_bias:
        inputs.append(bp)
        in_specs.append(pl.BlockSpec((1, tn), lambda i, j, k: (0, j)))

    bytes_accessed = (pad_M * pad_K * cbytes * grid_n
                      + pad_K * pad_N * cbytes * grid_m
                      + (pad_N * 4 * grid_m if has_bias else 0)
                      + pad_M * pad_N * jnp.dtype(out_dtype).itemsize)

    if softmax and plan.streaming:
        # ---- pass 1: matmul + online logsumexp --------------------------
        kernel = _make_matmul_lse_kernel(has_bias=has_bias, n_real=out_f,
                                         tn=tn)
        logits, lse = pl.pallas_call(
            kernel,
            out_shape=(jax.ShapeDtypeStruct((pad_M, pad_N), jnp.float32),
                       jax.ShapeDtypeStruct((pad_M, 1), jnp.float32)),
            grid_spec=pltpu.PrefetchScalarGridSpec(
                num_scalar_prefetch=0,
                grid=(grid_m, grid_n, grid_k),
                in_specs=in_specs,
                out_specs=[pl.BlockSpec((tm, tn), lambda i, j, k: (i, j)),
                           pl.BlockSpec((tm, 1), lambda i, j, k: (i, 0))],
                scratch_shapes=[pltpu.VMEM((tm, tn), jnp.float32),
                                pltpu.VMEM((tm, 1), jnp.float32),
                                pltpu.VMEM((tm, 1), jnp.float32)]),
            compiler_params=pltpu.CompilerParams(
                dimension_semantics=("parallel", "arbitrary", "arbitrary"),
                vmem_limit_bytes=plan.vmem_limit),
            cost_estimate=_cost(B, in_f, out_f, False, True, bytes_accessed),
        )(*inputs)

        # ---- pass 2: y - lse ---------------------------------------------
        out = pl.pallas_call(
            _logsoftmax_finalize_kernel,
            out_shape=jax.ShapeDtypeStruct((pad_M, pad_N), out_dtype),
            grid_spec=pltpu.PrefetchScalarGridSpec(
                num_scalar_prefetch=0,
                grid=(grid_m, grid_n),
                in_specs=[pl.BlockSpec((tm, tn), lambda i, j: (i, j)),
                          pl.BlockSpec((tm, 1), lambda i, j: (i, 0))],
                out_specs=pl.BlockSpec((tm, tn), lambda i, j: (i, j))),
            compiler_params=pltpu.CompilerParams(
                dimension_semantics=("parallel", "parallel"),
                vmem_limit_bytes=plan.vmem_limit),
        )(logits, lse)
    else:
        single_k = (grid_k == 1)
        kernel = _make_linear_kernel(sigmoid=sigmoid, softmax=softmax,
                                     has_bias=has_bias, n_real=out_f,
                                     single_k=single_k)
        scratch = [] if single_k else [pltpu.VMEM((tm, tn), jnp.float32)]
        out = pl.pallas_call(
            kernel,
            out_shape=jax.ShapeDtypeStruct((pad_M, pad_N), out_dtype),
            grid_spec=pltpu.PrefetchScalarGridSpec(
                num_scalar_prefetch=0,
                grid=(grid_m, grid_n, grid_k),
                in_specs=in_specs,
                out_specs=pl.BlockSpec((tm, tn), lambda i, j, k: (i, j)),
                scratch_shapes=scratch),
            compiler_params=pltpu.CompilerParams(
                dimension_semantics=("parallel", "parallel", "arbitrary"),
                vmem_limit_bytes=plan.vmem_limit),
            cost_estimate=_cost(B, in_f, out_f, sigmoid, softmax,
                                bytes_accessed),
        )(*inputs)

    if pad_M != B or pad_N != out_f:    # skip slice when already aligned
        out = out[:B, :out_f]
    if lead_shape != (B,):
        out = out.reshape(*lead_shape, out_f)
    return out


def linear_forward(z, weight_t, bias=None, *, sigmoid: bool = True,
                   softmax: bool = False, compute_dtype=jnp.bfloat16):
    """Uncached convenience entry point.  For repeated calls use LinearPallas,
    which pads/casts the weight once."""
    in_f, out_f = weight_t.shape
    plan = _make_plan(in_f, out_f, softmax=softmax, compute_dtype=compute_dtype,
                      has_bias=bias is not None)
    wp, bp = _prepare_params(weight_t, bias, plan, compute_dtype)
    return _linear_forward_prepared(z, wp, bp, plan=plan, in_f=in_f,
                                    out_f=out_f, sigmoid=sigmoid,
                                    softmax=softmax,
                                    compute_dtype=compute_dtype)


# --------------------------------------------------------------------------
# Module mirror
# --------------------------------------------------------------------------
class LinearPallas:
    """Mirror of the PyTorch `linear` module (fc -> sigmoid / log_softmax / id)."""

    def __init__(self, in_features, hid_features, out_features, bias=True,
                 sigmoid=True, softmax=False, T=0, key=None,
                 compute_dtype=jnp.bfloat16, force_streaming_softmax=False):
        # hid_features and T are unused in the reference module's forward.
        del hid_features, T
        if key is None:
            key = jax.random.PRNGKey(0)
        kw, kb = jax.random.split(key)
        bound = 1.0 / (in_features ** 0.5)
        # Stored pre-transposed: [in_features, out_features]
        self.weight_t = jax.random.uniform(
            kw, (in_features, out_features), jnp.float32, -bound, bound)
        self.bias = (jax.random.uniform(kb, (out_features,), jnp.float32,
                                        -bound, bound) if bias else None)
        self.sigmoid = sigmoid
        self.softmax = softmax
        self.in_features = in_features
        self.out_features = out_features
        self.compute_dtype = compute_dtype

        self._plan = _make_plan(in_features, out_features, softmax=softmax,
                                compute_dtype=compute_dtype, has_bias=bias,
                                force_streaming=force_streaming_softmax)
        # Perf: cast + pad the parameters exactly once (not per forward call).
        self._wp, self._bp = _prepare_params(self.weight_t, self.bias,
                                             self._plan, compute_dtype)

    def __call__(self, z):
        return _linear_forward_prepared(
            z, self._wp, self._bp, plan=self._plan,
            in_f=self.in_features, out_f=self.out_features,
            sigmoid=self.sigmoid, softmax=self.softmax,
            compute_dtype=self.compute_dtype)


# --------------------------------------------------------------------------
# Self-test
# --------------------------------------------------------------------------
if __name__ == "__main__":
    key = jax.random.PRNGKey(0)
    ks = jax.random.split(key, 8)

    B, in_f, hid_f, out_f = 8, 32, 64, 16
    z = jax.random.normal(ks[0], (B, in_f), jnp.float32)

    # 1) default path: sigmoid(fc(z)), single-K fast path (no accumulator)
    m1 = LinearPallas(in_f, hid_f, out_f, bias=True, sigmoid=True,
                      softmax=False, key=ks[1])
    o1 = jax.block_until_ready(m1(z))
    r1 = jax.nn.sigmoid(z @ m1.weight_t + m1.bias)
    assert o1.shape == (B, out_f)
    assert jnp.allclose(o1, r1, atol=2e-2, rtol=2e-2), \
        float(jnp.max(jnp.abs(o1 - r1)))

    # 2) fused (full-row) log_softmax path
    m2 = LinearPallas(in_f, hid_f, out_f, bias=True, sigmoid=False,
                      softmax=True, key=ks[2])
    o2 = jax.block_until_ready(m2(z))
    r2 = jax.nn.log_softmax(z @ m2.weight_t + m2.bias, axis=-1)
    assert jnp.allclose(o2, r2, atol=2e-2, rtol=2e-2), \
        float(jnp.max(jnp.abs(o2 - r2)))

    # 3) no-bias identity path with the f32-compute escape hatch
    m3 = LinearPallas(in_f, hid_f, out_f, bias=False, sigmoid=False,
                      softmax=False, key=ks[3], compute_dtype=jnp.float32)
    o3 = jax.block_until_ready(m3(z))
    r3 = z @ m3.weight_t
    assert jnp.allclose(o3, r3, atol=1e-5, rtol=1e-5), \
        float(jnp.max(jnp.abs(o3 - r3)))

    # 4) multi-K accumulator path (in_features > 1024 -> two K tiles)
    B4, in4, out4 = 16, 1536, 64
    z4 = jax.random.normal(ks[4], (B4, in4), jnp.float32)
    m4 = LinearPallas(in4, hid_f, out4, bias=True, sigmoid=True,
                      softmax=False, key=ks[5])
    o4 = jax.block_until_ready(m4(z4))
    r4 = jax.nn.sigmoid(z4 @ m4.weight_t + m4.bias)
    assert jnp.allclose(o4, r4, atol=2e-2, rtol=2e-2), \
        float(jnp.max(jnp.abs(o4 - r4)))

    # 5) streaming (online-logsumexp) log_softmax path, forced at small shape
    B5, in5, out5 = 24, 64, 640
    z5 = jax.random.normal(ks[6], (B5, in5), jnp.float32)
    m5 = LinearPallas(in5, hid_f, out5, bias=True, sigmoid=False,
                      softmax=True, key=ks[7], force_streaming_softmax=True)
    o5 = jax.block_until_ready(m5(z5))
    r5 = jax.nn.log_softmax(z5 @ m5.weight_t + m5.bias, axis=-1)
    assert o5.shape == (B5, out5)
    assert jnp.allclose(o5, r5, atol=2e-2, rtol=2e-2), \
        float(jnp.max(jnp.abs(o5 - r5)))

    print("KERNEL_OK")
</pallas_src>

<mosaic_0001>
module attributes {stable_mosaic.version = 11 : i64} {
  func.func @kernel(%arg0: i32, %arg1: i32, %arg2: i32, %arg3: memref<16x32xbf16, #tpu.memory_space<vmem>>, %arg4: memref<32x128xbf16, #tpu.memory_space<vmem>>, %arg5: memref<1x128xf32, #tpu.memory_space<vmem>>, %arg6: memref<16x128xf32, #tpu.memory_space<vmem>>) attributes {dimension_semantics = [#tpu.dimension_semantics<parallel>, #tpu.dimension_semantics<parallel>, #tpu.dimension_semantics<arbitrary>], iteration_bounds = array<i64: 1, 1, 1>, scalar_prefetch = 0 : i64, scratch_operands = 0 : i64, tpu.core_type = #tpu.core_type<tc>, window_params = [{transform_indices = @transform_0, window_bounds = array<i64: 16, 32>}, {transform_indices = @transform_1, window_bounds = array<i64: 32, 128>}, {transform_indices = @transform_2, window_bounds = array<i64: 1, 128>}, {transform_indices = @transform_3, window_bounds = array<i64: 16, 128>}]} {
    %c0 = arith.constant 0 : index
    %c0_0 = arith.constant 0 : index
    %0 = vector.load %arg3[%c0, %c0_0] : memref<16x32xbf16, #tpu.memory_space<vmem>>, vector<16x32xbf16>
    %c0_1 = arith.constant 0 : index
    %c0_2 = arith.constant 0 : index
    %1 = vector.load %arg4[%c0_1, %c0_2] : memref<32x128xbf16, #tpu.memory_space<vmem>>, vector<32x128xbf16>
    %cst = arith.constant dense<0.000000e+00> : vector<16x128xf32>
    %2 = tpu.matmul %0, %1, %cst {dimension_numbers = #tpu.dot_dimension_numbers<[1], [0], [0], [1], [0, 0, 1, 1], [], []>} : vector<16x32xbf16>, vector<32x128xbf16>, vector<16x128xf32> -> vector<16x128xf32>
    %c0_3 = arith.constant 0 : index
    %c0_4 = arith.constant 0 : index
    %3 = vector.load %arg5[%c0_3, %c0_4] : memref<1x128xf32, #tpu.memory_space<vmem>>, vector<1x128xf32>
    %4 = vector.broadcast %3 : vector<1x128xf32> to vector<16x128xf32>
    %5 = arith.addf %2, %4 : vector<16x128xf32>
    %6 = arith.negf %5 : vector<16x128xf32>
    %7 = math.exp %6 : vector<16x128xf32>
    %cst_5 = arith.constant 1.000000e+00 : f32
    %8 = vector.broadcast %cst_5 : f32 to vector<16x128xf32>
    %9 = arith.addf %8, %7 : vector<16x128xf32>
    %10 = arith.divf %8, %9 : vector<16x128xf32>
    %c0_6 = arith.constant 0 : index
    %c0_7 = arith.constant 0 : index
    %11 = vector.load %arg6[%c0_6, %c0_7] : memref<16x128xf32, #tpu.memory_space<vmem>>, vector<16x128xf32>
    tpu.vector_store %arg6[%c0_6, %c0_7], %10 {strides = array<i32>} : memref<16x128xf32, #tpu.memory_space<vmem>>, vector<16x128xf32>,
    return
  }
  func.func @transform_0(%arg0: i32, %arg1: i32, %arg2: i32) -> (i32, i32) {
    %c0_i32 = arith.constant 0 : i32
    return %arg0, %arg2 : i32, i32
  }
  func.func @transform_1(%arg0: i32, %arg1: i32, %arg2: i32) -> (i32, i32) {
    %c0_i32 = arith.constant 0 : i32
    return %arg2, %arg1 : i32, i32
  }
  func.func @transform_2(%arg0: i32, %arg1: i32, %arg2: i32) -> (i32, i32) {
    %c0_i32 = arith.constant 0 : i32
    %c0_i32_0 = arith.constant 0 : i32
    return %c0_i32, %arg1 : i32, i32
  }
  func.func @transform_3(%arg0: i32, %arg1: i32, %arg2: i32) -> (i32, i32) {
    %c0_i32 = arith.constant 0 : i32
    return %arg0, %arg1 : i32, i32
  }
}

</mosaic_0001>

<llo_original>
// kernel: tpu_custom_call.1
$region0: #{tpu_custom_call.1}
  #allocation0 [shape = 'u32[]', space=smem, size = 0x4, offset = 0x4, fixed_abs, tag = 'smem constant byte address 0x4 - core index']
  #allocation1 [shape = 'u32[144,128]{1,0:T(1,128)}', space=vmem, size = 0x12000, scoped, tag = 'internal scratch']
  %s0 = inlined_call_operand.hbm [shape: bf16[16,32], index: 0, kind: input, shape index: {}]
  %s1 = inlined_call_operand.hbm [shape: bf16[32,128], index: 1, kind: input, shape index: {}]
  %s2 = inlined_call_operand.vmem [shape: f32[1,128], index: 2, kind: input, shape index: {}]
  %s3 = inlined_call_operand.hbm [shape: f32[16,128], index: 3, kind: output, shape index: {}]
  %s4 = sld [smem:[#allocation0]]
  $region30: #{tpu_custom_call.1} parent=0
    _
  %s6 = ssub.s32 1, %s4
  %s7 = scalar_select 0, %s6, %s4
  $region1: #{tpu_custom_call.1} parent=0
    #allocation2 [shape = 'u8[4096]{0}', space=vmem, size = 0x1000, scoped, tag = 'input window, operand 0, single buffered']
    #allocation3 [shape = 's32[1]{0}', space=sflag, size = 0x4, scoped, tag = 'scoped memory for tpu_custom_call.1']
    #allocation4 [shape = 's32[1]{0}', space=sflag, size = 0x4, scoped, tag = 'scoped memory for tpu_custom_call.1']
    #allocation5 [shape = 'u8[8192]{0}', space=vmem, size = 0x2000, scoped, tag = 'input window, operand 1, single buffered']
    #allocation6 [shape = 's32[1]{0}', space=sflag, size = 0x4, scoped, tag = 'scoped memory for tpu_custom_call.1']
    #allocation7 [shape = 'u8[8192]{0}', space=vmem, size = 0x2000, scoped, tag = 'output window, operand 0, single buffered']
    %8 = vsyncpa [#allocation3], 0
    %9 = vsyncpa [#allocation6], 0
    %10 = vsyncpa [#allocation4], 0
    // Predicated region
    $region2: #{tpu_custom_call.1} parent=1 // pred_check
      _
    $region3: #{tpu_custom_call.1} parent=1 // pred_check_branch
      %12 = sbr.rel (0) target = $region5
    $region4: #{tpu_custom_call.1} parent=1 // pred_region
      %s14 = ssub.s32 128, 128
      %15 = vsyncadd [#allocation3], %s14
      %s16 = sshll.u32 [#allocation2], 4
      %s17 = int_to_ptr.vmem [resolvable:$true] %s16
      %22 = dma.hbm_to_vmem [thread:$0]  %s0, 128, %s17, [#allocation3], 64, 64, 4
    $region5: #{tpu_custom_call.1} parent=1 // pred_fallthru
      _
    // Predicated region
    $region6: #{tpu_custom_call.1} parent=1 // pred_check
      _
    $region7: #{tpu_custom_call.1} parent=1 // pred_check_branch
      %24 = sbr.rel (0) target = $region9
    $region8: #{tpu_custom_call.1} parent=1 // pred_region
      %s26 = ssub.s32 256, 256
      %27 = vsyncadd [#allocation6], %s26
      %s28 = sshll.u32 [#allocation5], 4
      %s29 = int_to_ptr.vmem [resolvable:$true] %s28
      %34 = dma.hbm_to_vmem [thread:$0]  %s1, 256, %s29, [#allocation6], 64, 64, 4
    $region9: #{tpu_custom_call.1} parent=1 // pred_fallthru
      _
    // Predicated region
    $region10: #{tpu_custom_call.1} parent=1 // pred_check
      _
    $region11: #{tpu_custom_call.1} parent=1 // pred_check_branch
      %36 = sbr.rel (0) target = $region13
    $region12: #{tpu_custom_call.1} parent=1 // pred_region
      _
    $region13: #{tpu_custom_call.1} parent=1 // pred_fallthru
      _
    // Predicated region
    $region14: #{tpu_custom_call.1} parent=1 // pred_check
      _
    $region15: #{tpu_custom_call.1} parent=1 // pred_check_branch
      %38 = sbr.rel (0) target = $region17
    $region16: #{tpu_custom_call.1} parent=1 // pred_region
      %39 = dma.done [#allocation3], 128
    $region17: #{tpu_custom_call.1} parent=1 // pred_fallthru
      _
    // Predicated region
    $region18: #{tpu_custom_call.1} parent=1 // pred_check
      _
    $region19: #{tpu_custom_call.1} parent=1 // pred_check_branch
      %41 = sbr.rel (0) target = $region21
    $region20: #{tpu_custom_call.1} parent=1 // pred_region
      %42 = dma.done [#allocation6], 256
    $region21: #{tpu_custom_call.1} parent=1 // pred_fallthru
      _
    %v44 = vld [vmem:[#allocation2] sm:$0xf]
    %v45 = vld [vmem:[#allocation2 + $0x4] sm:$0xf]
    %v46 = vld [vmem:[#allocation5] sm:$0xf]
    %v47 = vld [vmem:[#allocation5 + $0x4] sm:$0xf]
    %v48 = vld [vmem:[#allocation5 + $0x8] sm:$0xf]
    %v49 = vld [vmem:[#allocation5 + $0xc] sm:$0xf]
    %v50 = vld [vmem:[%s2] sm:$0x1]
    %v52 = vlaneseq
    %v53 = vshrl.u32 %v52, 7
    %v54 = vsub.s32 0, %v53
    %v55 = vrot.slane %v50, %v54
    %v59 = vunpack.c.l.b16 %v44
    %v60 = vunpack.c.l.b16 %v45
    %v61 = vpack.c.b16 %v60, %v59
    %v66 = vunpack.c.l.b16 %v46
    %v67 = vunpack.c.l.b16 %v47
    %v68 = vunpack.c.l.b16 %v48
    %v69 = vunpack.c.l.b16 %v49
    %v70 = vpack.c.b16 %v67, %v66
    %v71 = vpack.c.b16 %v69, %v68
    %vm74 = vcmask 261120
    %v76 = vsel %vm74, %v61, 0
    %78 = vmatprep.subr.bf16.mxu0 0
    %79 = vmatpush1.bf16.msra.mxu0 0
    %80 = vmatprep.subr.bf16.mxu0 0
    %81 = vmatpush1.bf16.msra.mxu0 0
    %82 = vmatprep.subr.bf16.mxu0 0
    %83 = vmatpush1.bf16.msra.mxu0 0
    %84 = vmatprep.subr.bf16.mxu0 0
    %85 = vmatpush1.bf16.msra.mxu0 0
    %86 = vmatprep.subr.bf16.mxu0 0
    %87 = vmatpush1.bf16.msra.mxu0 0
    %88 = vmatprep.subr.bf16.mxu0 0
    %89 = vmatpush1.bf16.msra.mxu0 0
    %90 = vmatprep.subr.bf16.mxu0 0
    %91 = vmatpush1.bf16.msra.mxu0 %v71
    %92 = vmatprep.subr.bf16.mxu0 0
    %93 = vmatpush1.bf16.msra.mxu0 %v70
    %94 = vmatprep.subr.bf16.mxu0 0
    %95 = vmatpush2.bf16.msra.mxu0 0
    %96 = vmatprep.subr.bf16.mxu0 0
    %97 = vmatpush2.bf16.msra.mxu0 0
    %98 = vmatprep.subr.bf16.mxu0 0
    %99 = vmatpush2.bf16.msra.mxu0 0
    %100 = vmatprep.subr.bf16.mxu0 0
    %101 = vmatpush2.bf16.msra.mxu0 0
    %102 = vmatprep.subr.bf16.mxu0 0
    %103 = vmatpush2.bf16.msra.mxu0 0
    %104 = vmatprep.subr.bf16.mxu0 0
    %105 = vmatpush2.bf16.msra.mxu0 0
    %106 = vmatprep.subr.bf16.mxu0 0
    %107 = vmatpush2.bf16.msra.mxu0 0
    %108 = vmatprep.subr.bf16.mxu0 0
    %109 = vmatpush2.bf16.msra.mxu0 0
    %110 = vmatprep.mubr.bf16.mxu0 0
    %111 = vmatmul.mubr.bf16.gmra.mxu0 %v76
    %v112 = vpop.f32.mrf.mxu0
    %v113 = vadd.f32 %v55, %v112
    %v114 = vpop.f32.mrf.mxu0
    %v115 = vpop.f32.mrf.mxu0
    %v116 = vadd.f32 %v55, %v115
    %v117 = vpop.f32.mrf.mxu0
    %118 = vdwg.mxu0
    %v119 = vxor.u32 %v113, 2147483648
    %v120 = vxor.u32 %v116, 2147483648
    %v121 = vmul.f32 %v119, 1.442695
    %v122 = vpow.pop %v121
    %v123 = vmul.f32 %v120, 1.442695
    %v124 = vpow.pop %v123
    %v125 = vadd.f32 %v122, 1.0
    %v126 = vadd.f32 %v124, 1.0
    %v127 = vrcp.pop %v125
    %v128 = vmul.f32 1.0, %v127
    %v129 = vrcp.pop %v126
    %v130 = vmul.f32 1.0, %v129
    %131 = vst [vmem:[#allocation7] sm:$0xff] %v128
    %132 = vst [vmem:[#allocation7 + $0x8] sm:$0xff] %v130
    // Predicated region
    $region22: #{tpu_custom_call.1} parent=1 // pred_check
      _
    $region23: #{tpu_custom_call.1} parent=1 // pred_check_branch
      %134 = sbr.rel (0) target = $region25
    $region24: #{tpu_custom_call.1} parent=1 // pred_region
      %s136 = ssub.s32 256, 256
      %137 = vsyncadd [#allocation4], %s136
      %s138 = sshll.u32 [#allocation7], 4
      %s139 = int_to_ptr.vmem [resolvable:$true] %s138
      %144 = dma.vmem_to_hbm [thread:$0]  %s139, 256, %s3, [#allocation4], 128, 128, 8
    $region25: #{tpu_custom_call.1} parent=1 // pred_fallthru
      _
    // Predicated region
    $region26: #{tpu_custom_call.1} parent=1 // pred_check
      _
    $region27: #{tpu_custom_call.1} parent=1 // pred_check_branch
      %146 = sbr.rel (0) target = $region29
    $region28: #{tpu_custom_call.1} parent=1 // pred_region
      %147 = dma.done [#allocation4], 256
    $region29: #{tpu_custom_call.1} parent=1 // pred_fallthru
      _
    %148 = vsyncpa [#allocation3], 1
    %149 = vsyncpa [#allocation6], 1
    %150 = vsyncpa [#allocation4], 1

</llo_original>
